<compile_context>
chip_gen: v7x
topology: tpu7x:2x2x1
jax: 0.10.0
libtpu: 0.0.40
codegen_flags: <defaults>
</compile_context>

<pallas_src>
import functools
import math

import jax
import jax.numpy as jnp
from jax.experimental import pallas as pl
from jax.experimental.pallas import tpu as pltpu

EPS = 1e-5  # nn.LayerNorm default


def _round_up(a, b):
    return ((a + b - 1) // b) * b


def _layernorm_f32(z, gamma, beta):
    """LayerNorm over the last axis; z is f32, gamma/beta are f32 (1, H)."""
    mean = jnp.mean(z, axis=-1, keepdims=True)
    zc = z - mean
    var = jnp.mean(zc * zc, axis=-1, keepdims=True)
    inv = jax.lax.rsqrt(var + EPS)
    return zc * inv * gamma + beta


def _add_norm_eval_kernel(gamma_ref, beta_ref, x_ref, y_ref, o_ref):
    z = x_ref[...].astype(jnp.float32) + y_ref[...].astype(jnp.float32)
    o_ref[...] = _layernorm_f32(z, gamma_ref[...], beta_ref[...]).astype(o_ref.dtype)


def _add_norm_train_kernel(gamma_ref, beta_ref, x_ref, y_ref, bits_ref, o_ref,
                           *, keep_threshold, scale):
    # Single select with the 1/(1-p) scale folded in; no materialized f32 mask.
    y = y_ref[...].astype(jnp.float32)
    keep = bits_ref[...] >= jnp.uint32(keep_threshold)
    y = jnp.where(keep, y * jnp.float32(scale), jnp.float32(0.0))
    z = x_ref[...].astype(jnp.float32) + y
    o_ref[...] = _layernorm_f32(z, gamma_ref[...], beta_ref[...]).astype(o_ref.dtype)


def _norm_x_only_kernel(gamma_ref, beta_ref, x_ref, o_ref):
    # dropout_rate >= 1.0 in training: y is fully dropped.
    z = x_ref[...].astype(jnp.float32)
    o_ref[...] = _layernorm_f32(z, gamma_ref[...], beta_ref[...]).astype(o_ref.dtype)


def _pick_tile_rows(rows, hidden, itemsize):
    """Row tile sized for an HBM-bandwidth-bound kernel (~4 MiB per stream)."""
    row_mult = max(8, 32 // max(1, itemsize))       # 8 (f32), 16 (bf16), 32 (i8)
    target_block_bytes = 4 * 1024 * 1024
    t = target_block_bytes // max(1, hidden * itemsize)
    t = max(row_mult, min(1024, (t // row_mult) * row_mult))
    t = min(t, _round_up(max(rows, 1), row_mult))   # never taller than padded input
    return t


def add_norm(x, y, gamma, beta, *, dropout_rate=0.1, training=False, key=None,
             tile_rows=None):
    """LayerNorm(dropout(y) + x).  x, y: (..., hidden); gamma, beta: (hidden,)."""
    if x.shape != y.shape:
        raise ValueError("x and y must have the same shape")
    if not (0.0 <= float(dropout_rate) <= 1.0):
        raise ValueError("dropout_rate must be in [0, 1]")
    orig_shape = x.shape
    hidden = orig_shape[-1]
    if gamma.shape != (hidden,) or beta.shape != (hidden,):
        raise ValueError("gamma/beta must have shape (hidden,)")

    rows = max(1, math.prod(orig_shape[:-1]))
    out_dtype = x.dtype
    x2 = x.reshape(rows, hidden)
    y2 = y.reshape(rows, hidden)
    # Cast params to f32 once here (not per grid step inside the kernel).
    gamma2 = gamma.reshape(1, hidden).astype(jnp.float32)
    beta2 = beta.reshape(1, hidden).astype(jnp.float32)

    drop_all = bool(training) and float(dropout_rate) >= 1.0
    use_dropout = bool(training) and float(dropout_rate) > 0.0 and not drop_all

    itemsize_min = min(jnp.dtype(x.dtype).itemsize, jnp.dtype(y.dtype).itemsize,
                       jnp.dtype(out_dtype).itemsize)
    row_mult = max(8, 32 // max(1, itemsize_min))
    if tile_rows is None:
        tile_rows = _pick_tile_rows(rows, hidden, itemsize_min)
    else:
        tile_rows = max(row_mult, (int(tile_rows) // row_mult) * row_mult)

    padded_rows = _round_up(rows, tile_rows)
    pad = padded_rows - rows
    if pad:
        x2 = jnp.pad(x2, ((0, pad), (0, 0)))
        y2 = jnp.pad(y2, ((0, pad), (0, 0)))

    fixed_map = lambda i: (0, 0)
    row_map = lambda i: (i, 0)
    param_spec = pl.BlockSpec((1, hidden), fixed_map)
    row_spec = pl.BlockSpec((tile_rows, hidden), row_map)

    in_specs = [param_spec, param_spec, row_spec]
    inputs = [gamma2, beta2, x2]
    stream_bytes = tile_rows * hidden * (jnp.dtype(x.dtype).itemsize
                                         + jnp.dtype(out_dtype).itemsize)

    if drop_all:
        kernel = _norm_x_only_kernel
    elif use_dropout:
        # TODO(synk): on-chip pltpu.prng_* would avoid streaming the mask bits,
        # but it has no interpret-mode lowering; generate bits host-side instead.
        if key is None:
            key = jax.random.PRNGKey(0)
        bits = jax.random.bits(key, (rows, hidden), dtype=jnp.uint32)
        if pad:
            bits = jnp.pad(bits, ((0, pad), (0, 0)))
        thr = min(int(round(float(dropout_rate) * (2.0 ** 32))), 2 ** 32 - 1)
        scale = 1.0 / (1.0 - float(dropout_rate))
        kernel = functools.partial(_add_norm_train_kernel,
                                   keep_threshold=thr, scale=scale)
        in_specs += [row_spec, row_spec]
        inputs += [y2, bits]
        stream_bytes += tile_rows * hidden * (jnp.dtype(y.dtype).itemsize + 4)
    else:
        kernel = _add_norm_eval_kernel
        in_specs += [row_spec]
        inputs += [y2]
        stream_bytes += tile_rows * hidden * jnp.dtype(y.dtype).itemsize

    # Double-buffered working set (+ resident f32 gamma/beta); cap at 48 MiB so
    # the same tiling fits v7x's 64 MiB VMEM as well as v5e/v6e's 128 MiB.
    working = 2 * stream_bytes + 4 * hidden * 4
    vmem_limit = int(min(48 * 1024 * 1024,
                         max(32 * 1024 * 1024, working + 8 * 1024 * 1024)))

    grid = (padded_rows // tile_rows,)
    out2 = pl.pallas_call(
        kernel,
        out_shape=jax.ShapeDtypeStruct((padded_rows, hidden), out_dtype),
        grid_spec=pltpu.PrefetchScalarGridSpec(
            num_scalar_prefetch=0,
            grid=grid,
            in_specs=in_specs,
            out_specs=pl.BlockSpec((tile_rows, hidden), row_map),
        ),
        compiler_params=pltpu.CompilerParams(
            dimension_semantics=("parallel",),   # lets v7x shard rows over 2 TCs
            vmem_limit_bytes=vmem_limit,
        ),
    )(*inputs)

    if pad:
        out2 = out2[:rows]
    # TODO(synk): for hidden < 128 the output is lane-sparse; a wrapper-side
    # reshape of rows into the lane dim would make stores lane-dense.
    return out2.reshape(orig_shape)


def _layernorm_ref(z, gamma, beta):
    mean = jnp.mean(z, axis=-1, keepdims=True)
    var = jnp.mean((z - mean) ** 2, axis=-1, keepdims=True)
    return (z - mean) * jax.lax.rsqrt(var + EPS) * gamma + beta


if __name__ == "__main__":
    batch, seq, hidden = 2, 8, 32
    dropout = 0.1

    key = jax.random.PRNGKey(0)
    kx, ky, kdrop = jax.random.split(key, 3)
    x = jax.random.normal(kx, (batch, seq, hidden), dtype=jnp.float32)
    y = jax.random.normal(ky, (batch, seq, hidden), dtype=jnp.float32)

    # LayerNorm parameters (nn.LayerNorm default init).
    gamma = jnp.ones((hidden,), dtype=jnp.float32)
    beta = jnp.zeros((hidden,), dtype=jnp.float32)

    # Eval-mode forward (dropout is identity), matching module.eval().
    out_eval = add_norm(x, y, gamma, beta, dropout_rate=dropout, training=False)
    jax.block_until_ready(out_eval)
    ref_eval = _layernorm_ref(x + y, gamma, beta)
    assert jnp.allclose(out_eval, ref_eval, atol=1e-5, rtol=1e-5), "eval mismatch"

    # Training-mode forward (dropout active), checked against an identical
    # reference built from the same deterministic random bits.
    out_train = add_norm(x, y, gamma, beta, dropout_rate=dropout, training=True,
                         key=kdrop)
    jax.block_until_ready(out_train)
    bits = jax.random.bits(kdrop, (batch * seq, hidden),
                           dtype=jnp.uint32).reshape(batch, seq, hidden)
    thr = min(int(round(dropout * (2.0 ** 32))), 2 ** 32 - 1)
    y_drop = jnp.where(bits >= jnp.uint32(thr),
                       y * jnp.float32(1.0 / (1.0 - dropout)), 0.0)
    ref_train = _layernorm_ref(x + y_drop, gamma, beta)
    assert jnp.allclose(out_train, ref_train, atol=1e-5, rtol=1e-5), "train mismatch"

    print("KERNEL_OK")
</pallas_src>

<mosaic_0001>
module attributes {stable_mosaic.version = 11 : i64} {
  func.func @_add_norm_eval_kernel(%arg0: i32, %arg1: memref<1x32xf32, #tpu.memory_space<vmem>>, %arg2: memref<1x32xf32, #tpu.memory_space<vmem>>, %arg3: memref<16x32xf32, #tpu.memory_space<vmem>>, %arg4: memref<16x32xf32, #tpu.memory_space<vmem>>, %arg5: memref<16x32xf32, #tpu.memory_space<vmem>>) attributes {dimension_semantics = [#tpu.dimension_semantics<parallel>], iteration_bounds = array<i64: 1>, scalar_prefetch = 0 : i64, scratch_operands = 0 : i64, tpu.core_type = #tpu.core_type<tc>, window_params = [{pipeline_mode = #tpu.pipeline_mode<synchronous>, transform_indices = @transform_0, window_bounds = array<i64: 1, 32>}, {pipeline_mode = #tpu.pipeline_mode<synchronous>, transform_indices = @transform_1, window_bounds = array<i64: 1, 32>}, {transform_indices = @transform_2, window_bounds = array<i64: 16, 32>}, {transform_indices = @transform_3, window_bounds = array<i64: 16, 32>}, {transform_indices = @transform_4, window_bounds = array<i64: 16, 32>}]} {
    %c0 = arith.constant 0 : index
    %c0_0 = arith.constant 0 : index
    %0 = vector.load %arg3[%c0, %c0_0] : memref<16x32xf32, #tpu.memory_space<vmem>>, vector<16x32xf32>
    %c0_1 = arith.constant 0 : index
    %c0_2 = arith.constant 0 : index
    %1 = vector.load %arg4[%c0_1, %c0_2] : memref<16x32xf32, #tpu.memory_space<vmem>>, vector<16x32xf32>
    %2 = arith.addf %0, %1 : vector<16x32xf32>
    %c0_3 = arith.constant 0 : index
    %c0_4 = arith.constant 0 : index
    %3 = vector.load %arg1[%c0_3, %c0_4] : memref<1x32xf32, #tpu.memory_space<vmem>>, vector<1x32xf32>
    %c0_5 = arith.constant 0 : index
    %c0_6 = arith.constant 0 : index
    %4 = vector.load %arg2[%c0_5, %c0_6] : memref<1x32xf32, #tpu.memory_space<vmem>>, vector<1x32xf32>
    %cst = arith.constant dense<0.000000e+00> : vector<16xf32>
    %5 = vector.multi_reduction <add>, %2, %cst [1] : vector<16x32xf32> to vector<16xf32>
    %6 = vector.shape_cast %5 : vector<16xf32> to vector<16x1xf32>
    %cst_7 = arith.constant 3.200000e+01 : f32
    %7 = vector.broadcast %cst_7 : f32 to vector<16x1xf32>
    %8 = arith.divf %6, %7 : vector<16x1xf32>
    %9 = vector.broadcast %8 : vector<16x1xf32> to vector<16x32xf32>
    %10 = arith.subf %2, %9 : vector<16x32xf32>
    %11 = arith.mulf %10, %10 : vector<16x32xf32>
    %cst_8 = arith.constant dense<0.000000e+00> : vector<16xf32>
    %12 = vector.multi_reduction <add>, %11, %cst_8 [1] : vector<16x32xf32> to vector<16xf32>
    %13 = vector.shape_cast %12 : vector<16xf32> to vector<16x1xf32>
    %cst_9 = arith.constant 3.200000e+01 : f32
    %14 = vector.broadcast %cst_9 : f32 to vector<16x1xf32>
    %15 = arith.divf %13, %14 : vector<16x1xf32>
    %cst_10 = arith.constant 9.99999974E-6 : f32
    %16 = vector.broadcast %cst_10 : f32 to vector<16x1xf32>
    %17 = arith.addf %15, %16 : vector<16x1xf32>
    %18 = math.rsqrt %17 : vector<16x1xf32>
    %19 = vector.broadcast %18 : vector<16x1xf32> to vector<16x32xf32>
    %20 = arith.mulf %10, %19 : vector<16x32xf32>
    %21 = vector.broadcast %3 : vector<1x32xf32> to vector<16x32xf32>
    %22 = arith.mulf %20, %21 : vector<16x32xf32>
    %23 = vector.broadcast %4 : vector<1x32xf32> to vector<16x32xf32>
    %24 = arith.addf %22, %23 : vector<16x32xf32>
    %c0_11 = arith.constant 0 : index
    %c0_12 = arith.constant 0 : index
    %25 = vector.load %arg5[%c0_11, %c0_12] : memref<16x32xf32, #tpu.memory_space<vmem>>, vector<16x32xf32>
    tpu.vector_store %arg5[%c0_11, %c0_12], %24 {strides = array<i32>} : memref<16x32xf32, #tpu.memory_space<vmem>>, vector<16x32xf32>,
    return
  }
  func.func @transform_0(%arg0: i32) -> (i32, i32) {
    %c0_i32 = arith.constant 0 : i32
    %c0_i32_0 = arith.constant 0 : i32
    %c0_i32_1 = arith.constant 0 : i32
    return %c0_i32, %c0_i32_0 : i32, i32
  }
  func.func @transform_1(%arg0: i32) -> (i32, i32) {
    %c0_i32 = arith.constant 0 : i32
    %c0_i32_0 = arith.constant 0 : i32
    %c0_i32_1 = arith.constant 0 : i32
    return %c0_i32, %c0_i32_0 : i32, i32
  }
  func.func @transform_2(%arg0: i32) -> (i32, i32) {
    %c0_i32 = arith.constant 0 : i32
    %c0_i32_0 = arith.constant 0 : i32
    return %arg0, %c0_i32 : i32, i32
  }
  func.func @transform_3(%arg0: i32) -> (i32, i32) {
    %c0_i32 = arith.constant 0 : i32
    %c0_i32_0 = arith.constant 0 : i32
    return %arg0, %c0_i32 : i32, i32
  }
  func.func @transform_4(%arg0: i32) -> (i32, i32) {
    %c0_i32 = arith.constant 0 : i32
    %c0_i32_0 = arith.constant 0 : i32
    return %arg0, %c0_i32 : i32, i32
  }
}

</mosaic_0001>

<llo_original>
// kernel: tpu_custom_call.1
$region0: #{tpu_custom_call.1}
  #allocation0 [shape = 'u32[]', space=smem, size = 0x4, offset = 0x4, fixed_abs, tag = 'smem constant byte address 0x4 - core index']
  #allocation1 [shape = 'u32[144,128]{1,0:T(1,128)}', space=vmem, size = 0x12000, scoped, tag = 'internal scratch']
  %s0 = inlined_call_operand.hbm [shape: f32[1,32], index: 0, kind: input, shape index: {}]
  %s1 = inlined_call_operand.vmem [shape: f32[1,32], index: 1, kind: input, shape index: {}]
  %s2 = inlined_call_operand.hbm [shape: f32[16,32], index: 2, kind: input, shape index: {}]
  %s3 = inlined_call_operand.hbm [shape: f32[16,32], index: 3, kind: input, shape index: {}]
  %s4 = inlined_call_operand.hbm [shape: f32[16,32], index: 4, kind: output, shape index: {}]
  %s5 = sld [smem:[#allocation0]]
  $region38: #{tpu_custom_call.1} parent=0
    _
  %s7 = ssub.s32 1, %s5
  %s8 = scalar_select 0, %s7, %s5
  $region1: #{tpu_custom_call.1} parent=0
    #allocation2 [shape = 'u8[512]{0}', space=vmem, size = 0x400, scoped, tag = 'input window, operand 0, single buffered']
    #allocation3 [shape = 's32[1]{0}', space=sflag, size = 0x4, scoped, tag = 'scoped memory for tpu_custom_call.1']
    #allocation4 [shape = 's32[1]{0}', space=sflag, size = 0x4, scoped, tag = 'scoped memory for tpu_custom_call.1']
    #allocation5 [shape = 'u8[8192]{0}', space=vmem, size = 0x2000, scoped, tag = 'input window, operand 2, single buffered']
    #allocation6 [shape = 's32[1]{0}', space=sflag, size = 0x4, scoped, tag = 'scoped memory for tpu_custom_call.1']
    #allocation7 [shape = 'u8[8192]{0}', space=vmem, size = 0x2000, scoped, tag = 'input window, operand 3, single buffered']
    #allocation8 [shape = 'u8[8192]{0}', space=vmem, size = 0x2000, scoped, tag = 'output window, operand 0, single buffered']
    %9 = vsyncpa [#allocation3], 0
    %10 = vsyncpa [#allocation6], 0
    %11 = vsyncpa [#allocation4], 0
    // Predicated region
    $region2: #{tpu_custom_call.1} parent=1 // pred_check
      _
    $region3: #{tpu_custom_call.1} parent=1 // pred_check_branch
      %13 = sbr.rel (0) target = $region5
    $region4: #{tpu_custom_call.1} parent=1 // pred_region
      %s15 = ssub.s32 16, 16
      %16 = vsyncadd [#allocation3], %s15
      %s18 = sshll.u32 [#allocation2], 4
      %s19 = int_to_ptr.vmem [resolvable:$true] %s18
      %21 = dma.hbm_to_vmem [thread:$0]  %s0, 16, %s19, [#allocation3]
    $region5: #{tpu_custom_call.1} parent=1 // pred_fallthru
      _
    // Predicated region
    $region6: #{tpu_custom_call.1} parent=1 // pred_check
      _
    $region7: #{tpu_custom_call.1} parent=1 // pred_check_branch
      %23 = sbr.rel (0) target = $region9
    $region8: #{tpu_custom_call.1} parent=1 // pred_region
      _
    $region9: #{tpu_custom_call.1} parent=1 // pred_fallthru
      _
    // Predicated region
    $region10: #{tpu_custom_call.1} parent=1 // pred_check
      _
    $region11: #{tpu_custom_call.1} parent=1 // pred_check_branch
      %25 = sbr.rel (0) target = $region13
    $region12: #{tpu_custom_call.1} parent=1 // pred_region
      %s27 = ssub.s32 256, 256
      %28 = vsyncadd [#allocation6], %s27
      %s29 = sshll.u32 [#allocation5], 4
      %s30 = int_to_ptr.vmem [resolvable:$true] %s29
      %35 = dma.hbm_to_vmem [thread:$0]  %s2, 256, %s30, [#allocation6], 128, 128, 8
    $region13: #{tpu_custom_call.1} parent=1 // pred_fallthru
      _
    // Predicated region
    $region14: #{tpu_custom_call.1} parent=1 // pred_check
      _
    $region15: #{tpu_custom_call.1} parent=1 // pred_check_branch
      %37 = sbr.rel (0) target = $region17
    $region16: #{tpu_custom_call.1} parent=1 // pred_region
      %s39 = ssub.s32 256, 256
      %40 = vsyncadd [#allocation6], %s39
      %s41 = sshll.u32 [#allocation7], 4
      %s42 = int_to_ptr.vmem [resolvable:$true] %s41
      %47 = dma.hbm_to_vmem [thread:$0]  %s3, 256, %s42, [#allocation6], 128, 128, 8
    $region17: #{tpu_custom_call.1} parent=1 // pred_fallthru
      _
    // Predicated region
    $region18: #{tpu_custom_call.1} parent=1 // pred_check
      _
    $region19: #{tpu_custom_call.1} parent=1 // pred_check_branch
      %49 = sbr.rel (0) target = $region21
    $region20: #{tpu_custom_call.1} parent=1 // pred_region
      %50 = dma.done [#allocation3], 16
    $region21: #{tpu_custom_call.1} parent=1 // pred_fallthru
      _
    // Predicated region
    $region22: #{tpu_custom_call.1} parent=1 // pred_check
      _
    $region23: #{tpu_custom_call.1} parent=1 // pred_check_branch
      %52 = sbr.rel (0) target = $region25
    $region24: #{tpu_custom_call.1} parent=1 // pred_region
      %53 = dma.done [#allocation6], 256
    $region25: #{tpu_custom_call.1} parent=1 // pred_fallthru
      _
    // Predicated region
    $region26: #{tpu_custom_call.1} parent=1 // pred_check
      _
    $region27: #{tpu_custom_call.1} parent=1 // pred_check_branch
      %55 = sbr.rel (0) target = $region29
    $region28: #{tpu_custom_call.1} parent=1 // pred_region
      %56 = dma.done [#allocation6], 256
    $region29: #{tpu_custom_call.1} parent=1 // pred_fallthru
      _
    %v57 = vld [vmem:[#allocation5] sm:$0xff]
    %v58 = vld [vmem:[#allocation5 + $0x8] sm:$0xff]
    %v59 = vld [vmem:[#allocation7] sm:$0xff]
    %v60 = vld [vmem:[#allocation7 + $0x8] sm:$0xff]
    %v61 = vadd.f32 %v57, %v59
    %v62 = vadd.f32 %v58, %v60
    %v63 = vld [vmem:[#allocation2] sm:$0x1]
    %v64 = vld [vmem:[%s1] sm:$0x1]
    %vm65 = vcmask 261120
    %v66 = vsel %vm65, %v61, 0.0
    %67 = vadd.xlane.f32.xlu0 %v66
    %v68 = vpop.xlane.xlu0 %67
    %v69 = vsel %vm65, %v62, 0.0
    %70 = vadd.xlane.f32.xlu0 %v69
    %v71 = vpop.xlane.xlu0 %70
    %v72 = vrcp.pop 32.0
    %v73 = vmul.f32 %v68, %v72
    %v74 = vmul.f32 %v71, %v72
    %v75 = vsub.f32 %v61, %v73
    %v76 = vsub.f32 %v62, %v74
    %v77 = vmul.f32 %v75, %v75
    %v78 = vmul.f32 %v76, %v76
    %v79 = vsel %vm65, %v77, 0.0
    %80 = vadd.xlane.f32.xlu0 %v79
    %v81 = vpop.xlane.xlu0 %80
    %v82 = vsel %vm65, %v78, 0.0
    %83 = vadd.xlane.f32.xlu0 %v82
    %v84 = vpop.xlane.xlu0 %83
    %v85 = vmul.f32 %v81, %v72
    %v86 = vmul.f32 %v84, %v72
    %v87 = vadd.f32 %v85, 1e-05
    %v88 = vadd.f32 %v86, 1e-05
    %v89 = vrsqrt.pop %v87
    %v90 = vrsqrt.pop %v88
    %v91 = vmul.f32 %v75, %v89
    %v92 = vmul.f32 %v76, %v90
    %v94 = vlaneseq
    %v95 = vshrl.u32 %v94, 7
    %v96 = vsub.s32 0, %v95
    %v97 = vrot.slane %v63, %v96
    %v99 = vmul.f32 %v91, %v97
    %v100 = vmul.f32 %v92, %v97
    %v102 = vlaneseq
    %v103 = vshrl.u32 %v102, 7
    %v104 = vsub.s32 0, %v103
    %v105 = vrot.slane %v64, %v104
    %v107 = vadd.f32 %v99, %v105
    %v108 = vadd.f32 %v100, %v105
    %109 = vst.msk [vmem:[#allocation8] sm:$0xff] %vm65, %v107
    %110 = vst.msk [vmem:[#allocation8 + $0x8] sm:$0xff] %vm65, %v108
    // Predicated region
    $region30: #{tpu_custom_call.1} parent=1 // pred_check
      _
    $region31: #{tpu_custom_call.1} parent=1 // pred_check_branch
      %112 = sbr.rel (0) target = $region33
    $region32: #{tpu_custom_call.1} parent=1 // pred_region
      %s114 = ssub.s32 256, 256
      %115 = vsyncadd [#allocation4], %s114
      %s116 = sshll.u32 [#allocation8], 4
      %s117 = int_to_ptr.vmem [resolvable:$true] %s116
      %122 = dma.vmem_to_hbm [thread:$0]  %s117, 256, %s4, [#allocation4], 128, 128, 8
    $region33: #{tpu_custom_call.1} parent=1 // pred_fallthru
      _
    // Predicated region
    $region34: #{tpu_custom_call.1} parent=1 // pred_check
      _
    $region35: #{tpu_custom_call.1} parent=1 // pred_check_branch
      %124 = sbr.rel (0) target = $region37
    $region36: #{tpu_custom_call.1} parent=1 // pred_region
      %125 = dma.done [#allocation4], 256
    $region37: #{tpu_custom_call.1} parent=1 // pred_fallthru
      _
    %126 = vsyncpa [#allocation3], 1
    %127 = vsyncpa [#allocation6], 1
    %128 = vsyncpa [#allocation4], 1

</llo_original>
